<compile_context>
chip_gen: v7x
topology: tpu7x:2x2x1
jax: 0.10.0
libtpu: 0.0.40
codegen_flags: <defaults>
</compile_context>

<pallas_src>
import jax
import jax.numpy as jnp
from jax import lax
from jax.experimental import pallas as pl
from jax.experimental.pallas import tpu as pltpu


def _round_up(x, m):
    return (x + m - 1) // m * m


def _cdiv(a, b):
    return -(-a // b)


def lora_kernel(x_ref, wu_ref, wv_ref, beff_ref, o_ref):
    # x_ref  : (TM, u_dim)   wu_ref : (r, u_dim)   (native PyTorch layout)
    # wv_ref : (r, v_dim)    beff_ref: (1, v_dim) f32   o_ref: (TM, v_dim)
    h = lax.dot_general(
        x_ref[...], wu_ref[...],
        dimension_numbers=(((1,), (1,)), ((), ())),
        preferred_element_type=jnp.float32)                    # (TM, r) f32
    y = jnp.dot(h.astype(wv_ref.dtype), wv_ref[...],
                preferred_element_type=jnp.float32)            # (TM, v_dim) f32
    o_ref[...] = (y + beff_ref[...]).astype(o_ref.dtype)


def _vmem_capacity_bytes():
    try:
        return int(pltpu.get_tpu_info().vmem_capacity_bytes)
    except Exception:
        return 64 * 1024 * 1024  # conservative (v7x per-TC)


def _vmem_usage(tm, u_dim, v_dim, r, itemsize):
    """Approximate VMEM bytes for one pipelined grid step."""
    lane = 128
    sub = 8
    # Streaming blocks, double-buffered by the BlockSpec pipeline.
    x_blk = tm * _round_up(u_dim, lane) * itemsize
    o_blk = tm * _round_up(v_dim, lane) * itemsize
    # Grid-invariant blocks: Pallas still allocates 2 buffers; account for
    # sublane/lane padding of the narrow-r tiles.
    wu_blk = _round_up(r, sub) * _round_up(u_dim, lane) * itemsize
    wv_blk = _round_up(r, sub) * _round_up(v_dim, lane) * itemsize
    be_blk = sub * _round_up(v_dim, lane) * 4
    # f32 intermediates (h and pre-cast output of the second dot).
    tmps = tm * (_round_up(r, lane) + _round_up(v_dim, lane)) * 4
    return 2 * (x_blk + o_blk + wu_blk + wv_blk + be_blk) + tmps


def _choose_tm(m, u_dim, v_dim, r, itemsize, tm_max, vmem_budget_bytes):
    """Largest row tile (multiple of 8, <= tm_max) fitting the VMEM budget,
    additionally capped so the grid has >= 2 steps when M allows it."""
    tm = _round_up(min(tm_max, max(m, 8)), 8)
    while tm > 8 and _vmem_usage(tm, u_dim, v_dim, r, itemsize) > vmem_budget_bytes:
        tm = _round_up(max(tm // 2, 8), 8)
    tm = max(tm, 8)
    if m > 8:
        # >= 2 grid steps so both v7x TensorCores get work (harmless on 1-TC chips).
        tm = min(tm, _round_up(_cdiv(m, 2), 8))
    return tm, _vmem_usage(tm, u_dim, v_dim, r, itemsize)


def lora_forward(x, w_u, b_u, w_v, b_v, *, tm_max=None):
    """x: (..., u_dim); w_u: (r, u_dim); w_v: (v_dim, r)  (PyTorch layout)."""
    u_dim = x.shape[-1]
    r = w_u.shape[0]
    v_dim = w_v.shape[0]
    lead = x.shape[:-1]

    x2d = x.reshape(-1, u_dim)
    m = x2d.shape[0]
    itemsize = jnp.dtype(x.dtype).itemsize

    capacity = _vmem_capacity_bytes()
    # Budget ~half of physical VMEM; larger tiles allowed on 128 MiB parts.
    vmem_budget = capacity // 2
    if tm_max is None:
        tm_max = 1024 if capacity >= 100 * 1024 * 1024 else 512

    tm, usage = _choose_tm(m, u_dim, v_dim, r, itemsize, tm_max, vmem_budget)
    grid_m = _cdiv(m, tm)  # ragged last block is masked by Pallas

    wu = jnp.asarray(w_u, x.dtype)                 # (r, u_dim), lane-dense
    wv_t = jnp.asarray(w_v, x.dtype).T             # (r, v_dim)
    # Fold b_u through W_v (exact since dropout is identity at p=0):
    #   (x Wu^T + b_u) Wv^T + b_v == x Wu^T Wv^T + b_eff
    b_eff = (b_u.astype(jnp.float32) @ w_v.T.astype(jnp.float32)
             + b_v.astype(jnp.float32)).reshape(1, v_dim)

    # Never request more than the chip physically has (v7x: 64 MiB).
    vmem_limit = int(min(capacity - 8 * 1024 * 1024,
                         max(32 * 1024 * 1024, 2 * usage)))

    cost = pl.CostEstimate(
        flops=2 * m * r * (u_dim + v_dim),
        transcendentals=0,
        bytes_accessed=itemsize * (m * u_dim + m * v_dim
                                   + r * u_dim + r * v_dim) + 4 * v_dim,
    )

    out = pl.pallas_call(
        lora_kernel,
        out_shape=jax.ShapeDtypeStruct((m, v_dim), x.dtype),
        grid_spec=pltpu.PrefetchScalarGridSpec(
            num_scalar_prefetch=0,
            grid=(grid_m,),
            in_specs=[
                pl.BlockSpec((tm, u_dim), lambda i: (i, 0)),
                pl.BlockSpec((r, u_dim), lambda i: (0, 0)),
                pl.BlockSpec((r, v_dim), lambda i: (0, 0)),
                pl.BlockSpec((1, v_dim), lambda i: (0, 0)),
            ],
            out_specs=pl.BlockSpec((tm, v_dim), lambda i: (i, 0)),
        ),
        compiler_params=pltpu.CompilerParams(
            dimension_semantics=("parallel",),
            vmem_limit_bytes=vmem_limit),
        cost_estimate=cost,
    )(x2d, wu, wv_t, b_eff)

    return out.reshape(*lead, v_dim)


if __name__ == "__main__":
    # Module config: Lora(u_dim=32, r=8, v_dim=32, dropout=0.0)
    # NOTE: at these toy sizes the kernel is pure overhead vs XLA fusion; the
    # tiling logic above targets production-scale u_dim/v_dim and large M.
    u_dim, r, v_dim = 32, 8, 32
    batch, seq = 2, 8

    key = jax.random.PRNGKey(0)
    kx, kwu, kbu, kwv, kbv = jax.random.split(key, 5)

    x = jax.random.normal(kx, (batch, seq, u_dim), dtype=jnp.float32)
    # Deterministic parameter init (nn.Linear-style uniform bounds).
    w_u = jax.random.uniform(kwu, (r, u_dim), minval=-1.0 / jnp.sqrt(u_dim),
                             maxval=1.0 / jnp.sqrt(u_dim), dtype=jnp.float32)
    b_u = jax.random.uniform(kbu, (r,), minval=-1.0 / jnp.sqrt(u_dim),
                             maxval=1.0 / jnp.sqrt(u_dim), dtype=jnp.float32)
    w_v = jax.random.uniform(kwv, (v_dim, r), minval=-1.0 / jnp.sqrt(r),
                             maxval=1.0 / jnp.sqrt(r), dtype=jnp.float32)
    b_v = jax.random.uniform(kbv, (v_dim,), minval=-1.0 / jnp.sqrt(r),
                             maxval=1.0 / jnp.sqrt(r), dtype=jnp.float32)

    y = lora_forward(x, w_u, b_u, w_v, b_v)
    jax.block_until_ready(y)

    # Reference check in plain JAX (same math as PyTorch forward at eval).
    ref = (x @ w_u.T + b_u) @ w_v.T + b_v
    assert y.shape == (batch, seq, v_dim)
    assert jnp.allclose(y, ref, atol=1e-5, rtol=1e-5)

    print("KERNEL_OK")
</pallas_src>

<mosaic_0001>
module attributes {stable_mosaic.version = 11 : i64} {
  func.func @lora_kernel(%arg0: i32, %arg1: memref<8x32xf32, #tpu.memory_space<vmem>>, %arg2: memref<8x32xf32, #tpu.memory_space<vmem>>, %arg3: memref<8x32xf32, #tpu.memory_space<vmem>>, %arg4: memref<1x32xf32, #tpu.memory_space<vmem>>, %arg5: memref<8x32xf32, #tpu.memory_space<vmem>>) attributes {dimension_semantics = [#tpu.dimension_semantics<parallel>], iteration_bounds = array<i64: 2>, scalar_prefetch = 0 : i64, scratch_operands = 0 : i64, tpu.core_type = #tpu.core_type<tc>, window_params = [{transform_indices = @transform_0, window_bounds = array<i64: 8, 32>}, {pipeline_mode = #tpu.pipeline_mode<synchronous>, transform_indices = @transform_1, window_bounds = array<i64: 8, 32>}, {pipeline_mode = #tpu.pipeline_mode<synchronous>, transform_indices = @transform_2, window_bounds = array<i64: 8, 32>}, {pipeline_mode = #tpu.pipeline_mode<synchronous>, transform_indices = @transform_3, window_bounds = array<i64: 1, 32>}, {transform_indices = @transform_4, window_bounds = array<i64: 8, 32>}]} {
    %c0 = arith.constant 0 : index
    %c0_0 = arith.constant 0 : index
    %0 = vector.load %arg1[%c0, %c0_0] : memref<8x32xf32, #tpu.memory_space<vmem>>, vector<8x32xf32>
    %c0_1 = arith.constant 0 : index
    %c0_2 = arith.constant 0 : index
    %1 = vector.load %arg2[%c0_1, %c0_2] : memref<8x32xf32, #tpu.memory_space<vmem>>, vector<8x32xf32>
    %cst = arith.constant dense<0.000000e+00> : vector<8x8xf32>
    %2 = tpu.matmul %0, %1, %cst {dimension_numbers = #tpu.dot_dimension_numbers<[1], [1], [0], [0], [0, 0, 1, 0], [], []>} : vector<8x32xf32>, vector<8x32xf32>, vector<8x8xf32> -> vector<8x8xf32>
    %c0_3 = arith.constant 0 : index
    %c0_4 = arith.constant 0 : index
    %3 = vector.load %arg3[%c0_3, %c0_4] : memref<8x32xf32, #tpu.memory_space<vmem>>, vector<8x32xf32>
    %cst_5 = arith.constant dense<0.000000e+00> : vector<8x32xf32>
    %4 = tpu.matmul %2, %3, %cst_5 {dimension_numbers = #tpu.dot_dimension_numbers<[1], [0], [0], [1], [0, 0, 1, 1], [], []>} : vector<8x8xf32>, vector<8x32xf32>, vector<8x32xf32> -> vector<8x32xf32>
    %c0_6 = arith.constant 0 : index
    %c0_7 = arith.constant 0 : index
    %5 = vector.load %arg4[%c0_6, %c0_7] : memref<1x32xf32, #tpu.memory_space<vmem>>, vector<1x32xf32>
    %6 = vector.broadcast %5 : vector<1x32xf32> to vector<8x32xf32>
    %7 = arith.addf %4, %6 : vector<8x32xf32>
    %c0_8 = arith.constant 0 : index
    %c0_9 = arith.constant 0 : index
    %8 = vector.load %arg5[%c0_8, %c0_9] : memref<8x32xf32, #tpu.memory_space<vmem>>, vector<8x32xf32>
    tpu.vector_store %arg5[%c0_8, %c0_9], %7 {strides = array<i32>} : memref<8x32xf32, #tpu.memory_space<vmem>>, vector<8x32xf32>,
    return
  }
  func.func @transform_0(%arg0: i32) -> (i32, i32) {
    %c0_i32 = arith.constant 0 : i32
    %c0_i32_0 = arith.constant 0 : i32
    return %arg0, %c0_i32 : i32, i32
  }
  func.func @transform_1(%arg0: i32) -> (i32, i32) {
    %c0_i32 = arith.constant 0 : i32
    %c0_i32_0 = arith.constant 0 : i32
    %c0_i32_1 = arith.constant 0 : i32
    return %c0_i32, %c0_i32_0 : i32, i32
  }
  func.func @transform_2(%arg0: i32) -> (i32, i32) {
    %c0_i32 = arith.constant 0 : i32
    %c0_i32_0 = arith.constant 0 : i32
    %c0_i32_1 = arith.constant 0 : i32
    return %c0_i32, %c0_i32_0 : i32, i32
  }
  func.func @transform_3(%arg0: i32) -> (i32, i32) {
    %c0_i32 = arith.constant 0 : i32
    %c0_i32_0 = arith.constant 0 : i32
    %c0_i32_1 = arith.constant 0 : i32
    return %c0_i32, %c0_i32_0 : i32, i32
  }
  func.func @transform_4(%arg0: i32) -> (i32, i32) {
    %c0_i32 = arith.constant 0 : i32
    %c0_i32_0 = arith.constant 0 : i32
    return %arg0, %c0_i32 : i32, i32
  }
}

</mosaic_0001>

<llo_original>
// kernel: tpu_custom_call.1
$region0: #{tpu_custom_call.1}
  #allocation0 [shape = 'u32[]', space=smem, size = 0x4, offset = 0x4, fixed_abs, tag = 'smem constant byte address 0x4 - core index']
  #allocation1 [shape = 'u32[144,128]{1,0:T(1,128)}', space=vmem, size = 0x12000, scoped, tag = 'internal scratch']
  %s0 = inlined_call_operand.hbm [shape: f32[16,32], index: 0, kind: input, shape index: {}]
  %s1 = inlined_call_operand.hbm [shape: f32[8,32], index: 1, kind: input, shape index: {}]
  %s2 = inlined_call_operand.hbm [shape: f32[8,32], index: 2, kind: input, shape index: {}]
  %s3 = inlined_call_operand.vmem [shape: f32[1,32], index: 3, kind: input, shape index: {}]
  %s4 = inlined_call_operand.hbm [shape: f32[16,32], index: 4, kind: output, shape index: {}]
  %s5 = sld [smem:[#allocation0]]
  $region61: #{tpu_custom_call.1} parent=0
    _
  %s7 = ssub.s32 1, %s5
  %s8 = scalar_select 0, %s7, %s5
  $region1: #{tpu_custom_call.1} parent=0
    #allocation2 [shape = 'u8[8192]{0}', space=vmem, size = 0x2000, scoped, tag = 'input window, operand 0']
    #allocation3 [shape = 's32[2]{0}', space=sflag, size = 0x8, scoped, tag = 'scoped memory for tpu_custom_call.1']
    #allocation4 [shape = 's32[2]{0}', space=sflag, size = 0x8, scoped, tag = 'scoped memory for tpu_custom_call.1']
    #allocation5 [shape = 'u8[4096]{0}', space=vmem, size = 0x1000, scoped, tag = 'input window, operand 1, single buffered']
    #allocation6 [shape = 's32[1]{0}', space=sflag, size = 0x4, scoped, tag = 'scoped memory for tpu_custom_call.1']
    #allocation7 [shape = 'u8[4096]{0}', space=vmem, size = 0x1000, scoped, tag = 'input window, operand 2, single buffered']
    #allocation8 [shape = 'u8[8192]{0}', space=vmem, size = 0x2000, scoped, tag = 'output window, operand 0']
    %9 = vsyncpa [#allocation3], 0
    %s10 = scalar_lea.sflag [#allocation3], 1
    %11 = vsyncpa %s10, 0
    %12 = vsyncpa [#allocation6], 0
    %13 = vsyncpa [#allocation4], 0
    %s14 = scalar_lea.sflag [#allocation4], 1
    %15 = vsyncpa %s14, 0
    loop: start=0, step=1, limit=4
    $region2: #{tpu_custom_call.1} parent=1 // loop_pre_header
      _
    $region3: #{tpu_custom_call.1} parent=1 // loop_header
      %s17 = sphi 0, %s21
      %p18 = scmp.ge.s32.totalorder %s17, 4
      %s27 = sphi 0, %s29
      %s30 = sphi 0, %s27
      %s31 = sphi 0, %s30
      %s47 = sphi 0, %s31
      %s51 = sphi 0, %s51
      %s53 = sphi 0, %s51
      %s54 = sphi 0, %s53
      %s68 = sphi 0, %s54
      %s72 = sphi 0, %s72
      %s74 = sphi 0, %s72
      %s75 = sphi 0, %s74
      %s89 = sphi 0, %s75
      %s93 = sphi 0, %s93
      %s95 = sphi 0, %s93
      %s96 = sphi 0, %s95
      %s110 = sphi 0, %s96
      %s116 = sphi 0, %s118
      %s119 = sphi 0, %s116
      %s120 = sphi 0, %s119
      %s136 = sphi 0, %s120
    $region4: #{tpu_custom_call.1} parent=1 // loop_header_branch
      %20 = sbr.rel (%p18) target = $region8
    $region5: #{tpu_custom_call.1} parent=1 // loop_body
      %s22 = ssub.s32 %s17, 1
      %s23 = ssub.s32 %s17, 2
      %s24 = sadd.s32 %s17, 1
      %s25 = ssub.s32 %s17, %s24
      %p26 = scmp.eq.s32.totalorder %s25, 0
      %s28 = sadd.s32 %s27, 1
      %s29 = scalar_select %p26, %s27, %s28
      %p32 = pneg %p26
      %p33 = scmp.eq.s32.totalorder %s17, 1
      %p34 = por %p32, %p33
      %p35 = scmp.ne.s32.totalorder %s27, %s30
      %p36 = scmp.eq.s32.totalorder %s17, 0
      %p37 = por %p35, %p36
      %p38 = scmp.ne.s32.totalorder %s27, %s30
      %p39 = scmp.eq.s32.totalorder %s22, 1
      %p40 = por %p38, %p39
      %p41 = scmp.ne.s32.totalorder %s30, %s31
      %p42 = scmp.eq.s32.totalorder %s22, 0
      %p43 = por %p41, %p42
      %p44 = scmp.ne.s32.totalorder %s30, %s31
      %p45 = scmp.eq.s32.totalorder %s23, 1
      %p46 = por %p44, %p45
      %p48 = scmp.ne.s32.totalorder %s31, %s47
      %p49 = scmp.eq.s32.totalorder %s23, 0
      %p50 = por %p48, %p49
      %s52 = sadd.s32 %s51, 1
      %p55 = scmp.eq.s32.totalorder %s17, 1
      %p56 = scmp.ne.s32.totalorder %s51, %s53
      %p57 = scmp.eq.s32.totalorder %s17, 0
      %p58 = por %p56, %p57
      %p59 = scmp.ne.s32.totalorder %s51, %s53
      %p60 = scmp.eq.s32.totalorder %s22, 1
      %p61 = por %p59, %p60
      %p62 = scmp.ne.s32.totalorder %s53, %s54
      %p63 = scmp.eq.s32.totalorder %s22, 0
      %p64 = por %p62, %p63
      %p65 = scmp.ne.s32.totalorder %s53, %s54
      %p66 = scmp.eq.s32.totalorder %s23, 1
      %p67 = por %p65, %p66
      %p69 = scmp.ne.s32.totalorder %s54, %s68
      %p70 = scmp.eq.s32.totalorder %s23, 0
      %p71 = por %p69, %p70
      %s73 = sadd.s32 %s72, 1
      %p76 = scmp.eq.s32.totalorder %s17, 1
      %p77 = scmp.ne.s32.totalorder %s72, %s74
      %p78 = scmp.eq.s32.totalorder %s17, 0
      %p79 = por %p77, %p78
      %p80 = scmp.ne.s32.totalorder %s72, %s74
      %p81 = scmp.eq.s32.totalorder %s22, 1
      %p82 = por %p80, %p81
      %p83 = scmp.ne.s32.totalorder %s74, %s75
      %p84 = scmp.eq.s32.totalorder %s22, 0
      %p85 = por %p83, %p84
      %p86 = scmp.ne.s32.totalorder %s74, %s75
      %p87 = scmp.eq.s32.totalorder %s23, 1
      %p88 = por %p86, %p87
      %p90 = scmp.ne.s32.totalorder %s75, %s89
      %p91 = scmp.eq.s32.totalorder %s23, 0
      %p92 = por %p90, %p91
      %s94 = sadd.s32 %s93, 1
      %p97 = scmp.eq.s32.totalorder %s17, 1
      %p98 = scmp.ne.s32.totalorder %s93, %s95
      %p99 = scmp.eq.s32.totalorder %s17, 0
      %p100 = por %p98, %p99
      %p101 = scmp.ne.s32.totalorder %s93, %s95
      %p102 = scmp.eq.s32.totalorder %s22, 1
      %p103 = por %p101, %p102
      %p104 = scmp.ne.s32.totalorder %s95, %s96
      %p105 = scmp.eq.s32.totalorder %s22, 0
      %p106 = por %p104, %p105
      %p107 = scmp.ne.s32.totalorder %s95, %s96
      %p108 = scmp.eq.s32.totalorder %s23, 1
      %p109 = por %p107, %p108
      %p111 = scmp.ne.s32.totalorder %s96, %s110
      %p112 = scmp.eq.s32.totalorder %s23, 0
      %p113 = por %p111, %p112
      %s114 = ssub.s32 %s17, %s24
      %p115 = scmp.eq.s32.totalorder %s114, 0
      %s117 = sadd.s32 %s116, 1
      %s118 = scalar_select %p115, %s116, %s117
      %p121 = pneg %p115
      %p122 = scmp.eq.s32.totalorder %s17, 1
      %p123 = por %p121, %p122
      %p124 = scmp.ne.s32.totalorder %s116, %s119
      %p125 = scmp.eq.s32.totalorder %s17, 0
      %p126 = por %p124, %p125
      %p127 = scmp.ne.s32.totalorder %s116, %s119
      %p128 = scmp.eq.s32.totalorder %s22, 1
      %p129 = por %p127, %p128
      %p130 = scmp.ne.s32.totalorder %s119, %s120
      %p131 = scmp.eq.s32.totalorder %s22, 0
      %p132 = por %p130, %p131
      %p133 = scmp.ne.s32.totalorder %s119, %s120
      %p134 = scmp.eq.s32.totalorder %s23, 1
      %p135 = por %p133, %p134
      %p137 = scmp.ne.s32.totalorder %s120, %s136
      %p138 = scmp.eq.s32.totalorder %s23, 0
      %p139 = por %p137, %p138
      %p140 = scmp.le.s32.totalorder 1, %s17
      %p141 = scmp.lt.s32.totalorder %s17, 3
      %p142 = pnand %p140, %p141
      %p143 = pneg %p142
      // Predicated region
      $region9: #{tpu_custom_call.1} parent=5 // pred_check
        _
      $region10: #{tpu_custom_call.1} parent=5 // pred_check_branch
        %145 = sbr.rel (%p142) target = $region12
      $region11: #{tpu_custom_call.1} parent=5 // pred_region
        %s146 = ssub.s32 %s17, 1
        // Predicated region
        $region13: #{tpu_custom_call.1} parent=11 // pred_check
          %p147 = pneg %p64
        $region14: #{tpu_custom_call.1} parent=11 // pred_check_branch
          %149 = sbr.rel (%p147) target = $region16
        $region15: #{tpu_custom_call.1} parent=11 // pred_region
          %s151 = ssub.s32 128, 128
          %152 = vsyncadd [#allocation6], %s151
          %s154 = sshll.u32 [#allocation5], 4
          %s155 = int_to_ptr.vmem [resolvable:$true] %s154
          %157 = dma.hbm_to_vmem [thread:$0]  %s1, 128, %s155, [#allocation6]
        $region16: #{tpu_custom_call.1} parent=11 // pred_fallthru
          _
        // Predicated region
        $region17: #{tpu_custom_call.1} parent=11 // pred_check
          %p158 = pneg %p85
        $region18: #{tpu_custom_call.1} parent=11 // pred_check_branch
          %160 = sbr.rel (%p158) target = $region20
        $region19: #{tpu_custom_call.1} parent=11 // pred_region
          %s162 = ssub.s32 128, 128
          %163 = vsyncadd [#allocation6], %s162
          %s165 = sshll.u32 [#allocation7], 4
          %s166 = int_to_ptr.vmem [resolvable:$true] %s165
          %168 = dma.hbm_to_vmem [thread:$0]  %s2, 128, %s166, [#allocation6]
        $region20: #{tpu_custom_call.1} parent=11 // pred_fallthru
          _
        // Predicated region
        $region21: #{tpu_custom_call.1} parent=11 // pred_check
          %p169 = pneg %p106
        $region22: #{tpu_custom_call.1} parent=11 // pred_check_branch
          %171 = sbr.rel (%p169) target = $region24
        $region23: #{tpu_custom_call.1} parent=11 // pred_region
          _
        $region24: #{tpu_custom_call.1} parent=11 // pred_fallthru
          _
      $region12: #{tpu_custom_call.1} parent=5 // pred_fallthru
        _
      %p172 = scmp.lt.s32.totalorder %s17, 2
      // Predicated region
      $region25: #{tpu_custom_call.1} parent=5 // pred_check
        %p173 = pneg %p172
      $region26: #{tpu_custom_call.1} parent=5 // pred_check_branch
        %175 = sbr.rel (%p173) target = $region28
      $region27: #{tpu_custom_call.1} parent=5 // pred_region
        // Predicated region
        $region29: #{tpu_custom_call.1} parent=27 // pred_check
          %p176 = pneg %p37
        $region30: #{tpu_custom_call.1} parent=27 // pred_check_branch
          %178 = sbr.rel (%p176) target = $region32
        $region31: #{tpu_custom_call.1} parent=27 // pred_region
          %s179 = sand.u32 %s27, 1
          %s180 = scalar_lea.sflag [#allocation3], %s179
          %s181 = sand.u32 %s27, 1
          %s182 = smul.addr %s181, 8
          %s183 = scalar_lea.vmem [#allocation2], %s182
          %s185 = ssub.s32 128, 128
          %186 = vsyncadd %s180, %s185
          %s187 = smul.addr %s17, 128
          %s188 = scalar_lea.hbm %s0, %s187
          %s190 = sshll.u32 %s183, 4
          %s191 = int_to_ptr.vmem [resolvable:$true] %s190
          %193 = dma.hbm_to_vmem [thread:$0]  %s188, 128, %s191, %s180
        $region32: #{tpu_custom_call.1} parent=27 // pred_fallthru
          _
      $region28: #{tpu_custom_call.1} parent=5 // pred_fallthru
        _
      %p194 = scmp.le.s32.totalorder 1, %s17
      %p195 = scmp.lt.s32.totalorder %s17, 3
      %p196 = pnand %p194, %p195
      %p197 = pneg %p196
      // Predicated region
      $region33: #{tpu_custom_call.1} parent=5 // pred_check
        _
      $region34: #{tpu_custom_call.1} parent=5 // pred_check_branch
        %199 = sbr.rel (%p196) target = $region36
      $region35: #{tpu_custom_call.1} parent=5 // pred_region
        %s200 = ssub.s32 %s17, 1
        %s201 = sand.u32 %s30, 1
        %s202 = scalar_lea.sflag [#allocation3], %s201
        %s203 = sand.u32 %s30, 1
        %s204 = smul.addr %s203, 8
        %s205 = scalar_lea.vmem [#allocation2], %s204
        // Predicated region
        $region37: #{tpu_custom_call.1} parent=35 // pred_check
          %p206 = pneg %p43
        $region38: #{tpu_custom_call.1} parent=35 // pred_check_branch
          %208 = sbr.rel (%p206) target = $region40
        $region39: #{tpu_custom_call.1} parent=35 // pred_region
          %209 = dma.done %s202, 128
        $region40: #{tpu_custom_call.1} parent=35 // pred_fallthru
          _
        // Predicated region
        $region41: #{tpu_custom_call.1} parent=35 // pred_check
          %p210 = pneg %p64
        $region42: #{tpu_custom_call.1} parent=35 // pred_check_branch
          %212 = sbr.rel (%p210) target = $region44
        $region43: #{tpu_custom_call.1} parent=35 // pred_region
          %213 = dma.done [#allocation6], 128
        $region44: #{tpu_custom_call.1} parent=35 // pred_fallthru
          _
        // Predicated region
        $region45: #{tpu_custom_call.1} parent=35 // pred_check
          %p214 = pneg %p85
        $region46: #{tpu_custom_call.1} parent=35 // pred_check_branch
          %216 = sbr.rel (%p214) target = $region48
        $region47: #{tpu_custom_call.1} parent=35 // pred_region
          %217 = dma.done [#allocation6], 128
        $region48: #{tpu_custom_call.1} parent=35 // pred_fallthru
          _
        %s218 = sand.u32 %s30, 1
        %s219 = scalar_lea.sflag [#allocation3], %s218
        %s220 = sand.u32 %s30, 1
        %s221 = smul.addr %s220, 8
        %s222 = scalar_lea.vmem [#allocation2], %s221
        %p223 = pneg %p43
        %p224 = pneg %p40
        %p225 = pneg %p64
        %p226 = pneg %p61
        %p227 = pneg %p85
        %p228 = pneg %p82
        %p229 = pneg %p106
        %p230 = pneg %p103
        %p231 = pneg %p132
        %p232 = pneg %p129
        %s233 = sand.u32 %s119, 1
        %s234 = scalar_lea.sflag [#allocation4], %s233
        %s235 = sand.u32 %s119, 1
        %s236 = smul.addr %s235, 8
        %s237 = scalar_lea.vmem [#allocation8], %s236
        %v238 = vld [vmem:[%s205] sm:$0xff]
        %v239 = vld [vmem:[#allocation5] sm:$0xff]
        %vm240 = vcmask 261120
        %v242 = vsel %vm240, %v238, 0
        %v245 = vsel %vm240, %v239, 0
        %247 = vmatprep.subr.mxu0 0.0
        %248 = vmatpush1.xpose.msra.mxu0 %v245
        %249 = vmatprep.subr.mxu0 0.0
        %250 = vmatpush1.xpose.msra.mxu0 0.0
        %251 = vmatprep.subr.mxu0 0.0
        %252 = vmatpush1.xpose.msra.mxu0 0.0
        %253 = vmatprep.subr.mxu0 0.0
        %254 = vmatpush1.xpose.msra.mxu0 0.0
        %255 = vmatprep.subr.mxu0 0.0
        %256 = vmatpush1.xpose.msra.mxu0 0.0
        %257 = vmatprep.subr.mxu0 0.0
        %258 = vmatpush1.xpose.msra.mxu0 0.0
        %259 = vmatprep.subr.mxu0 0.0
        %260 = vmatpush1.xpose.msra.mxu0 0.0
        %261 = vmatprep.subr.mxu0 0.0
        %262 = vmatpush1.xpose.msra.mxu0 0.0
        %263 = vmatprep.subr.mxu0 0.0
        %264 = vmatpush1.xpose.msra.mxu0 0.0
        %265 = vmatprep.subr.mxu0 0.0
        %266 = vmatpush1.xpose.msra.mxu0 0.0
        %267 = vmatprep.subr.mxu0 0.0
        %268 = vmatpush1.xpose.msra.mxu0 0.0
        %269 = vmatprep.subr.mxu0 0.0
        %270 = vmatpush1.xpose.msra.mxu0 0.0
        %271 = vmatprep.subr.mxu0 0.0
        %272 = vmatpush1.xpose.msra.mxu0 0.0
        %273 = vmatprep.subr.mxu0 0.0
        %274 = vmatpush1.xpose.msra.mxu0 0.0
        %275 = vmatprep.subr.mxu0 0.0
        %276 = vmatpush1.xpose.msra.mxu0 0.0
        %277 = vmatprep.subr.mxu0 0.0
        %278 = vmatpush1.xpose.msra.mxu0 0.0
        %279 = vmatprep.subr.mxu0 0.0
        %280 = vmatpush1.xpose.msra.mxu0 0.0
        %281 = vmatprep.subr.mxu0 0.0
        %282 = vmatpush1.xpose.msra.mxu0 0.0
        %283 = vmatprep.subr.mxu0 0.0
        %284 = vmatpush1.xpose.msra.mxu0 0.0
        %285 = vmatprep.subr.mxu0 0.0
        %286 = vmatpush1.xpose.msra.mxu0 0.0
        %287 = vmatprep.subr.mxu0 0.0
        %288 = vmatpush1.xpose.msra.mxu0 0.0
        %289 = vmatprep.subr.mxu0 0.0
        %290 = vmatpush1.xpose.msra.mxu0 0.0
        %291 = vmatprep.subr.mxu0 0.0
        %292 = vmatpush1.xpose.msra.mxu0 0.0
        %293 = vmatprep.subr.mxu0 0.0
        %294 = vmatpush1.xpose.msra.mxu0 0.0
        %295 = vmatprep.subr.mxu0 0.0
        %296 = vmatpush1.xpose.msra.mxu0 0.0
        %297 = vmatprep.subr.mxu0 0.0
        %298 = vmatpush1.xpose.msra.mxu0 0.0
        %299 = vmatprep.subr.mxu0 0.0
        %300 = vmatpush1.xpose.msra.mxu0 0.0
        %301 = vmatprep.subr.mxu0 0.0
        %302 = vmatpush1.xpose.msra.mxu0 0.0
        %303 = vmatprep.subr.mxu0 0.0
        %304 = vmatpush1.xpose.msra.mxu0 0.0
        %305 = vmatprep.subr.mxu0 0.0
        %306 = vmatpush1.xpose.msra.mxu0 0.0
        %307 = vmatprep.subr.mxu0 0.0
        %308 = vmatpush1.xpose.msra.mxu0 0.0
        %309 = vmatprep.subr.mxu0 0.0
        %310 = vmatpush1.xpose.msra.mxu0 0.0
        %311 = vmatprep.mubr.f32.mxu0 0.0
        %312 = vmatmul.mubr.f32.gmra.mrb[0].mxu0 %v242
        %v313 = vpop.f32.mrb[0].mxu0
        %v314 = vadd.f32 0.0, %v313
        %v315 = vpop.f32.mrb[0].mxu0
        %316 = vdwg.mxu0
        %v317 = vld [vmem:[#allocation7] sm:$0xff]
        %v318 = vld [vmem:[%s3] sm:$0x1]
        %v320 = vlaneseq
        %v321 = vshrl.u32 %v320, 7
        %v322 = vsub.s32 0, %v321
        %v323 = vrot.slane %v318, %v322
        %vm325 = vcmask 64512
        %v327 = vsel %vm325, %v314, 0
        %329 = vmatprep.subr.mxu0 0.0
        %330 = vmatpush1.msra.mxu0 %v317
        %331 = vmatprep.subr.mxu0 0.0
        %332 = vmatpush1.msra.mxu0 0.0
        %333 = vmatprep.subr.mxu0 0.0
        %334 = vmatpush1.msra.mxu0 0.0
        %335 = vmatprep.subr.mxu0 0.0
        %336 = vmatpush1.msra.mxu0 0.0
        %337 = vmatprep.subr.mxu0 0.0
        %338 = vmatpush1.msra.mxu0 0.0
        %339 = vmatprep.subr.mxu0 0.0
        %340 = vmatpush1.msra.mxu0 0.0
        %341 = vmatprep.subr.mxu0 0.0
        %342 = vmatpush1.msra.mxu0 0.0
        %343 = vmatprep.subr.mxu0 0.0
        %344 = vmatpush1.msra.mxu0 0.0
        %345 = vmatprep.subr.mxu0 0.0
        %346 = vmatpush1.msra.mxu0 0.0
        %347 = vmatprep.subr.mxu0 0.0
        %348 = vmatpush1.msra.mxu0 0.0
        %349 = vmatprep.subr.mxu0 0.0
        %350 = vmatpush1.msra.mxu0 0.0
        %351 = vmatprep.subr.mxu0 0.0
        %352 = vmatpush1.msra.mxu0 0.0
        %353 = vmatprep.subr.mxu0 0.0
        %354 = vmatpush1.msra.mxu0 0.0
        %355 = vmatprep.subr.mxu0 0.0
        %356 = vmatpush1.msra.mxu0 0.0
        %357 = vmatprep.subr.mxu0 0.0
        %358 = vmatpush1.msra.mxu0 0.0
        %359 = vmatprep.subr.mxu0 0.0
        %360 = vmatpush1.msra.mxu0 0.0
        %361 = vmatprep.subr.mxu0 0.0
        %362 = vmatpush1.msra.mxu0 0.0
        %363 = vmatprep.subr.mxu0 0.0
        %364 = vmatpush1.msra.mxu0 0.0
        %365 = vmatprep.subr.mxu0 0.0
        %366 = vmatpush1.msra.mxu0 0.0
        %367 = vmatprep.subr.mxu0 0.0
        %368 = vmatpush1.msra.mxu0 0.0
        %369 = vmatprep.subr.mxu0 0.0
        %370 = vmatpush1.msra.mxu0 0.0
        %371 = vmatprep.subr.mxu0 0.0
        %372 = vmatpush1.msra.mxu0 0.0
        %373 = vmatprep.subr.mxu0 0.0
        %374 = vmatpush1.msra.mxu0 0.0
        %375 = vmatprep.subr.mxu0 0.0
        %376 = vmatpush1.msra.mxu0 0.0
        %377 = vmatprep.subr.mxu0 0.0
        %378 = vmatpush1.msra.mxu0 0.0
        %379 = vmatprep.subr.mxu0 0.0
        %380 = vmatpush1.msra.mxu0 0.0
        %381 = vmatprep.subr.mxu0 0.0
        %382 = vmatpush1.msra.mxu0 0.0
        %383 = vmatprep.subr.mxu0 0.0
        %384 = vmatpush1.msra.mxu0 0.0
        %385 = vmatprep.subr.mxu0 0.0
        %386 = vmatpush1.msra.mxu0 0.0
        %387 = vmatprep.subr.mxu0 0.0
        %388 = vmatpush1.msra.mxu0 0.0
        %389 = vmatprep.subr.mxu0 0.0
        %390 = vmatpush1.msra.mxu0 0.0
        %391 = vmatprep.subr.mxu0 0.0
        %392 = vmatpush1.msra.mxu0 0.0
        %393 = vmatprep.mubr.f32.mxu0 0.0
        %394 = vmatmul.mubr.f32.gmra.mrb[0].mxu0 %v327
        %v395 = vpop.f32.mrb[0].mxu0
        %v396 = vadd.f32 %v323, %v395
        %v397 = vpop.f32.mrb[0].mxu0
        %398 = vdwg.mxu0
        %399 = vst.msk [vmem:[%s237] sm:$0xff] %vm240, %v396
        %s400 = sand.u32 %s119, 1
        %s401 = scalar_lea.sflag [#allocation4], %s400
        %s402 = sand.u32 %s119, 1
        %s403 = smul.addr %s402, 8
        %s404 = scalar_lea.vmem [#allocation8], %s403
        // Predicated region
        $region49: #{tpu_custom_call.1} parent=35 // pred_check
          %p405 = pneg %p129
        $region50: #{tpu_custom_call.1} parent=35 // pred_check_branch
          %407 = sbr.rel (%p405) target = $region52
        $region51: #{tpu_custom_call.1} parent=35 // pred_region
          %s409 = ssub.s32 128, 128
          %410 = vsyncadd %s401, %s409
          %s411 = smul.addr %s22, 128
          %s412 = scalar_lea.hbm %s4, %s411
          %s414 = sshll.u32 %s404, 4
          %s415 = int_to_ptr.vmem [resolvable:$true] %s414
          %417 = dma.vmem_to_hbm [thread:$0]  %s415, 128, %s412, %s401
        $region52: #{tpu_custom_call.1} parent=35 // pred_fallthru
          _
      $region36: #{tpu_custom_call.1} parent=5 // pred_fallthru
        _
      %p418 = scmp.le.s32.totalorder 2, %s17
      // Predicated region
      $region53: #{tpu_custom_call.1} parent=5 // pred_check
        %p419 = pneg %p418
      $region54: #{tpu_custom_call.1} parent=5 // pred_check_branch
        %421 = sbr.rel (%p419) target = $region56
      $region55: #{tpu_custom_call.1} parent=5 // pred_region
        %s422 = ssub.s32 %s17, 2
        // Predicated region
        $region57: #{tpu_custom_call.1} parent=55 // pred_check
          %p423 = pneg %p135
        $region58: #{tpu_custom_call.1} parent=55 // pred_check_branch
          %425 = sbr.rel (%p423) target = $region60
        $region59: #{tpu_custom_call.1} parent=55 // pred_region
          %s426 = sand.u32 %s120, 1
          %s427 = scalar_lea.sflag [#allocation4], %s426
          %s428 = sand.u32 %s120, 1
          %s429 = smul.addr %s428, 8
          %s430 = scalar_lea.vmem [#allocation8], %s429
          %431 = dma.done %s427, 128
        $region60: #{tpu_custom_call.1} parent=55 // pred_fallthru
          _
      $region56: #{tpu_custom_call.1} parent=5 // pred_fallthru
        _
    $region6: #{tpu_custom_call.1} parent=1 // loop_footer
      %s21 = sadd.s32 1, %s17
    $region7: #{tpu_custom_call.1} parent=1 // loop_footer_branch
      %16 = sbr.rel target = $region3
    $region8: #{tpu_custom_call.1} parent=1 // loop_exit
      _
    %432 = vsyncpa [#allocation3], 1
    %s433 = scalar_lea.sflag [#allocation3], 1
    %434 = vsyncpa %s433, 1
    %435 = vsyncpa [#allocation6], 1
    %436 = vsyncpa [#allocation4], 1
    %s437 = scalar_lea.sflag [#allocation4], 1
    %438 = vsyncpa %s437, 1

</llo_original>
